<compile_context>
chip_gen: v6e
topology: v6e:2x2x1
jax: 0.10.0
libtpu: 0.0.40
codegen_flags: <defaults>
</compile_context>

<pallas_src>
import jax
import jax.numpy as jnp
from jax.experimental import pallas as pl
from jax.experimental.pallas import tpu as pltpu

HIDDEN = 128      # hidden width of the module (fixed by the spec)
HEAD_PAD = 128    # lane-dense padded width of the fused value|advantage head


def dueling_dqn_kernel(
    x_ref,
    w1_ref, b1_ref, w2_ref, b2_ref,        # feature layer (bf16)
    w_va1_ref, b_va1_ref,                  # fused value|advantage hidden layer
    w_head_ref, b_head_ref,                # fused (block-diagonal) head
    out_ref,                               # (TM, HEAD_PAD) bf16 slab: [V | A | 0...]
):
    x = x_ref[...]                         # bf16

    # --- feature layer: Linear -> ReLU -> Linear -> ReLU (bf16 MXU, f32 acc) ---
    h = jnp.dot(x, w1_ref[...], preferred_element_type=jnp.float32) + b1_ref[...]
    h = jnp.maximum(h, 0.0).astype(jnp.bfloat16)
    h = jnp.dot(h, w2_ref[...], preferred_element_type=jnp.float32) + b2_ref[...]
    h = jnp.maximum(h, 0.0).astype(jnp.bfloat16)

    # --- fused value/advantage hidden layer: (TM,128) @ (128,256) ---
    va = jnp.dot(h, w_va1_ref[...], preferred_element_type=jnp.float32) + b_va1_ref[...]
    va = jnp.maximum(va, 0.0).astype(jnp.bfloat16)

    # --- fused head: (TM,256) @ (256,128) -> lane-dense slab ---
    # column 0      : V  = relu(h@wv1+bv1) @ wv2 + bv2
    # columns 1..A  : A  = relu(h@wa1+ba1) @ wa2 + ba2
    # columns A+1.. : 0
    out = (
        jnp.dot(va, w_head_ref[...], preferred_element_type=jnp.float32)
        + b_head_ref[...]
    )
    out_ref[...] = out.astype(out_ref.dtype)


def fuse_params(p, output_dim):
    """Fold the value/advantage streams into fused, lane-dense bf16 weights."""
    assert output_dim + 1 <= HEAD_PAD, (
        f"output_dim={output_dim} does not fit the {HEAD_PAD}-lane fused head")
    H = HIDDEN
    w_va1 = jnp.concatenate([p["wv1"], p["wa1"]], axis=1)          # (H, 2H)
    b_va1 = jnp.concatenate([p["bv1"], p["ba1"]], axis=1)          # (1, 2H)

    w_head = jnp.zeros((2 * H, HEAD_PAD), jnp.float32)
    w_head = w_head.at[:H, 0:1].set(p["wv2"])                      # value path
    w_head = w_head.at[H:, 1:1 + output_dim].set(p["wa2"])         # advantage path
    b_head = jnp.zeros((1, HEAD_PAD), jnp.float32)
    b_head = b_head.at[:, 0:1].set(p["bv2"])
    b_head = b_head.at[:, 1:1 + output_dim].set(p["ba2"])

    fused = dict(
        w1=p["w1"], b1=p["b1"], w2=p["w2"], b2=p["b2"],
        w_va1=w_va1, b_va1=b_va1, w_head=w_head, b_head=b_head,
    )
    # bf16 on the MXU path (accumulation stays f32 inside the kernel).
    return {k: v.astype(jnp.bfloat16) for k, v in fused.items()}


def _round_up(v, m):
    return ((v + m - 1) // m) * m


def dueling_dqn_forward(x, fused, output_dim, tm=1024):
    """x: (B, input_dim); fused: output of fuse_params. Returns (B, output_dim) f32."""
    B, din = x.shape
    H = HIDDEN

    # Batch tile: multiple of 8 (sublane), at most tm.  If that would give a
    # single grid step, split into (at least) 2 steps so the "parallel" axis
    # can shard across both TensorCores on v7x (no-op on v5e/v6e).
    TM = _round_up(min(tm, B), 8)
    if pl.cdiv(B, TM) < 2:
        TM = max(8, _round_up(pl.cdiv(B, 2), 8))
    B_pad = pl.cdiv(B, TM) * TM

    x = x.astype(jnp.bfloat16)
    if B_pad != B:
        x = jnp.pad(x, ((0, B_pad - B), (0, 0)))

    args = (
        x,
        fused["w1"], fused["b1"], fused["w2"], fused["b2"],
        fused["w_va1"], fused["b_va1"], fused["w_head"], fused["b_head"],
    )

    flops = 2 * B_pad * (din * H + H * H + H * 2 * H + 2 * H * HEAD_PAD)
    bytes_accessed = (
        sum(int(a.size) * a.dtype.itemsize for a in args)
        + B_pad * HEAD_PAD * 2                      # bf16 output slab
    )

    # Resident operands: block index constant across the grid.
    weight_resident = lambda shape: pl.BlockSpec(shape, lambda i: (0, 0))

    grid_spec = pltpu.PrefetchScalarGridSpec(
        num_scalar_prefetch=0,
        grid=(B_pad // TM,),
        in_specs=[
            pl.BlockSpec((TM, din), lambda i: (i, 0)),   # x: tiled over batch
            weight_resident((din, H)),                   # w1
            weight_resident((1, H)),                     # b1
            weight_resident((H, H)),                     # w2
            weight_resident((1, H)),                     # b2
            weight_resident((H, 2 * H)),                 # w_va1
            weight_resident((1, 2 * H)),                 # b_va1
            weight_resident((2 * H, HEAD_PAD)),          # w_head
            weight_resident((1, HEAD_PAD)),              # b_head
        ],
        out_specs=pl.BlockSpec((TM, HEAD_PAD), lambda i: (i, 0)),
    )

    slab = pl.pallas_call(
        dueling_dqn_kernel,
        out_shape=jax.ShapeDtypeStruct((B_pad, HEAD_PAD), jnp.bfloat16),
        grid_spec=grid_spec,
        compiler_params=pltpu.CompilerParams(
            dimension_semantics=("parallel",),
        ),
        cost_estimate=pl.CostEstimate(
            flops=flops, transcendentals=0, bytes_accessed=bytes_accessed,
        ),
    )(*args)

    # Slice the lane-dense slab back to the real outputs; combine in f32.
    slab = slab[:B].astype(jnp.float32)
    values = slab[:, 0:1]                        # (B, 1)
    advantages = slab[:, 1:1 + output_dim]       # (B, output_dim)

    # Dueling combine with the module's GLOBAL mean over all advantage elements
    # (matches `advantages.mean()` in the PyTorch forward).
    return values + (advantages - jnp.mean(advantages))


def init_params(key, input_dim, output_dim, hidden=HIDDEN):
    """PyTorch-Linear-style init (uniform +/- 1/sqrt(fan_in)).

    Weights are stored transposed: (in_features, out_features); biases (1, out).
    """
    def linear(key, fan_in, fan_out):
        kw, kb = jax.random.split(key)
        bound = 1.0 / jnp.sqrt(fan_in)
        w = jax.random.uniform(kw, (fan_in, fan_out), jnp.float32, -bound, bound)
        b = jax.random.uniform(kb, (1, fan_out), jnp.float32, -bound, bound)
        return w, b

    keys = jax.random.split(key, 6)
    w1, b1 = linear(keys[0], input_dim, hidden)
    w2, b2 = linear(keys[1], hidden, hidden)
    wv1, bv1 = linear(keys[2], hidden, hidden)
    wv2, bv2 = linear(keys[3], hidden, 1)
    wa1, ba1 = linear(keys[4], hidden, hidden)
    wa2, ba2 = linear(keys[5], hidden, output_dim)
    return dict(
        w1=w1, b1=b1, w2=w2, b2=b2,
        wv1=wv1, bv1=bv1, wv2=wv2, bv2=bv2,
        wa1=wa1, ba1=ba1, wa2=wa2, ba2=ba2,
    )


def dueling_dqn_reference(x, p):
    """Pure-JAX f32 reference mirroring the PyTorch forward (unfused params)."""
    h = jnp.maximum(x @ p["w1"] + p["b1"], 0.0)
    h = jnp.maximum(h @ p["w2"] + p["b2"], 0.0)
    v = jnp.maximum(h @ p["wv1"] + p["bv1"], 0.0) @ p["wv2"] + p["bv2"]
    a = jnp.maximum(h @ p["wa1"] + p["ba1"], 0.0) @ p["wa2"] + p["ba2"]
    return v + (a - jnp.mean(a))


if __name__ == "__main__":
    INPUT_DIM = 32
    OUTPUT_DIM = 4
    BATCH = 8   # tiny inference shape: single grid step, fixed-overhead dominated

    key = jax.random.PRNGKey(0)
    k_params, k_x = jax.random.split(key)
    params = init_params(k_params, INPUT_DIM, OUTPUT_DIM)
    fused = fuse_params(params, OUTPUT_DIM)
    x = jax.random.normal(k_x, (BATCH, INPUT_DIM), jnp.float32)

    q = dueling_dqn_forward(x, fused, OUTPUT_DIM)
    q = jax.block_until_ready(q)

    q_ref = dueling_dqn_reference(x, params)
    assert q.shape == (BATCH, OUTPUT_DIM)
    # bf16 MXU path vs f32 reference: relaxed tolerance.
    assert jnp.allclose(q, q_ref, atol=5e-2, rtol=5e-2), "mismatch vs JAX reference"

    print("KERNEL_OK")
</pallas_src>

<mosaic_0001>
module attributes {stable_mosaic.version = 11 : i64} {
  func.func @dueling_dqn_kernel(%arg0: i32, %arg1: memref<8x32xbf16, #tpu.memory_space<vmem>>, %arg2: memref<32x128xbf16, #tpu.memory_space<vmem>>, %arg3: memref<1x128xbf16, #tpu.memory_space<vmem>>, %arg4: memref<128x128xbf16, #tpu.memory_space<vmem>>, %arg5: memref<1x128xbf16, #tpu.memory_space<vmem>>, %arg6: memref<128x256xbf16, #tpu.memory_space<vmem>>, %arg7: memref<1x256xbf16, #tpu.memory_space<vmem>>, %arg8: memref<256x128xbf16, #tpu.memory_space<vmem>>, %arg9: memref<1x128xbf16, #tpu.memory_space<vmem>>, %arg10: memref<8x128xbf16, #tpu.memory_space<vmem>>) attributes {dimension_semantics = [#tpu.dimension_semantics<parallel>], iteration_bounds = array<i64: 1>, scalar_prefetch = 0 : i64, scratch_operands = 0 : i64, tpu.core_type = #tpu.core_type<tc>, window_params = [{transform_indices = @transform_0, window_bounds = array<i64: 8, 32>}, {pipeline_mode = #tpu.pipeline_mode<synchronous>, transform_indices = @transform_1, window_bounds = array<i64: 32, 128>}, {pipeline_mode = #tpu.pipeline_mode<synchronous>, transform_indices = @transform_2, window_bounds = array<i64: 1, 128>}, {pipeline_mode = #tpu.pipeline_mode<synchronous>, transform_indices = @transform_3, window_bounds = array<i64: 128, 128>}, {pipeline_mode = #tpu.pipeline_mode<synchronous>, transform_indices = @transform_4, window_bounds = array<i64: 1, 128>}, {pipeline_mode = #tpu.pipeline_mode<synchronous>, transform_indices = @transform_5, window_bounds = array<i64: 128, 256>}, {pipeline_mode = #tpu.pipeline_mode<synchronous>, transform_indices = @transform_6, window_bounds = array<i64: 1, 256>}, {pipeline_mode = #tpu.pipeline_mode<synchronous>, transform_indices = @transform_7, window_bounds = array<i64: 256, 128>}, {pipeline_mode = #tpu.pipeline_mode<synchronous>, transform_indices = @transform_8, window_bounds = array<i64: 1, 128>}, {transform_indices = @transform_9, window_bounds = array<i64: 8, 128>}]} {
    %c0 = arith.constant 0 : index
    %c0_0 = arith.constant 0 : index
    %0 = vector.load %arg1[%c0, %c0_0] : memref<8x32xbf16, #tpu.memory_space<vmem>>, vector<8x32xbf16>
    %c0_1 = arith.constant 0 : index
    %c0_2 = arith.constant 0 : index
    %1 = vector.load %arg2[%c0_1, %c0_2] : memref<32x128xbf16, #tpu.memory_space<vmem>>, vector<32x128xbf16>
    %cst = arith.constant dense<0.000000e+00> : vector<8x128xf32>
    %2 = tpu.matmul %0, %1, %cst {dimension_numbers = #tpu.dot_dimension_numbers<[1], [0], [0], [1], [0, 0, 1, 1], [], []>} : vector<8x32xbf16>, vector<32x128xbf16>, vector<8x128xf32> -> vector<8x128xf32>
    %c0_3 = arith.constant 0 : index
    %c0_4 = arith.constant 0 : index
    %3 = vector.load %arg3[%c0_3, %c0_4] : memref<1x128xbf16, #tpu.memory_space<vmem>>, vector<1x128xbf16>
    %4 = arith.extf %3 : vector<1x128xbf16> to vector<1x128xf32>
    %5 = vector.broadcast %4 : vector<1x128xf32> to vector<8x128xf32>
    %6 = arith.addf %2, %5 : vector<8x128xf32>
    %cst_5 = arith.constant 0.000000e+00 : f32
    %7 = vector.broadcast %cst_5 : f32 to vector<8x128xf32>
    %8 = arith.maximumf %6, %7 : vector<8x128xf32>
    %9 = arith.truncf %8 : vector<8x128xf32> to vector<8x128xbf16>
    %c0_6 = arith.constant 0 : index
    %c0_7 = arith.constant 0 : index
    %10 = vector.load %arg4[%c0_6, %c0_7] : memref<128x128xbf16, #tpu.memory_space<vmem>>, vector<128x128xbf16>
    %cst_8 = arith.constant dense<0.000000e+00> : vector<8x128xf32>
    %11 = tpu.matmul %9, %10, %cst_8 {dimension_numbers = #tpu.dot_dimension_numbers<[1], [0], [0], [1], [0, 0, 1, 1], [], []>} : vector<8x128xbf16>, vector<128x128xbf16>, vector<8x128xf32> -> vector<8x128xf32>
    %c0_9 = arith.constant 0 : index
    %c0_10 = arith.constant 0 : index
    %12 = vector.load %arg5[%c0_9, %c0_10] : memref<1x128xbf16, #tpu.memory_space<vmem>>, vector<1x128xbf16>
    %13 = arith.extf %12 : vector<1x128xbf16> to vector<1x128xf32>
    %14 = vector.broadcast %13 : vector<1x128xf32> to vector<8x128xf32>
    %15 = arith.addf %11, %14 : vector<8x128xf32>
    %cst_11 = arith.constant 0.000000e+00 : f32
    %16 = vector.broadcast %cst_11 : f32 to vector<8x128xf32>
    %17 = arith.maximumf %15, %16 : vector<8x128xf32>
    %18 = arith.truncf %17 : vector<8x128xf32> to vector<8x128xbf16>
    %c0_12 = arith.constant 0 : index
    %c0_13 = arith.constant 0 : index
    %19 = vector.load %arg6[%c0_12, %c0_13] : memref<128x256xbf16, #tpu.memory_space<vmem>>, vector<128x256xbf16>
    %cst_14 = arith.constant dense<0.000000e+00> : vector<8x256xf32>
    %20 = tpu.matmul %18, %19, %cst_14 {dimension_numbers = #tpu.dot_dimension_numbers<[1], [0], [0], [1], [0, 0, 1, 1], [], []>} : vector<8x128xbf16>, vector<128x256xbf16>, vector<8x256xf32> -> vector<8x256xf32>
    %c0_15 = arith.constant 0 : index
    %c0_16 = arith.constant 0 : index
    %21 = vector.load %arg7[%c0_15, %c0_16] : memref<1x256xbf16, #tpu.memory_space<vmem>>, vector<1x256xbf16>
    %22 = arith.extf %21 : vector<1x256xbf16> to vector<1x256xf32>
    %23 = vector.broadcast %22 : vector<1x256xf32> to vector<8x256xf32>
    %24 = arith.addf %20, %23 : vector<8x256xf32>
    %cst_17 = arith.constant 0.000000e+00 : f32
    %25 = vector.broadcast %cst_17 : f32 to vector<8x256xf32>
    %26 = arith.maximumf %24, %25 : vector<8x256xf32>
    %27 = arith.truncf %26 : vector<8x256xf32> to vector<8x256xbf16>
    %c0_18 = arith.constant 0 : index
    %c0_19 = arith.constant 0 : index
    %28 = vector.load %arg8[%c0_18, %c0_19] : memref<256x128xbf16, #tpu.memory_space<vmem>>, vector<256x128xbf16>
    %cst_20 = arith.constant dense<0.000000e+00> : vector<8x128xf32>
    %29 = tpu.matmul %27, %28, %cst_20 {dimension_numbers = #tpu.dot_dimension_numbers<[1], [0], [0], [1], [0, 0, 1, 1], [], []>} : vector<8x256xbf16>, vector<256x128xbf16>, vector<8x128xf32> -> vector<8x128xf32>
    %c0_21 = arith.constant 0 : index
    %c0_22 = arith.constant 0 : index
    %30 = vector.load %arg9[%c0_21, %c0_22] : memref<1x128xbf16, #tpu.memory_space<vmem>>, vector<1x128xbf16>
    %31 = arith.extf %30 : vector<1x128xbf16> to vector<1x128xf32>
    %32 = vector.broadcast %31 : vector<1x128xf32> to vector<8x128xf32>
    %33 = arith.addf %29, %32 : vector<8x128xf32>
    %34 = arith.truncf %33 : vector<8x128xf32> to vector<8x128xbf16>
    %c0_23 = arith.constant 0 : index
    %c0_24 = arith.constant 0 : index
    %35 = vector.load %arg10[%c0_23, %c0_24] : memref<8x128xbf16, #tpu.memory_space<vmem>>, vector<8x128xbf16>
    tpu.vector_store %arg10[%c0_23, %c0_24], %34 {strides = array<i32>} : memref<8x128xbf16, #tpu.memory_space<vmem>>, vector<8x128xbf16>,
    return
  }
  func.func @transform_0(%arg0: i32) -> (i32, i32) {
    %c0_i32 = arith.constant 0 : i32
    %c0_i32_0 = arith.constant 0 : i32
    return %arg0, %c0_i32 : i32, i32
  }
  func.func @transform_1(%arg0: i32) -> (i32, i32) {
    %c0_i32 = arith.constant 0 : i32
    %c0_i32_0 = arith.constant 0 : i32
    %c0_i32_1 = arith.constant 0 : i32
    return %c0_i32, %c0_i32_0 : i32, i32
  }
  func.func @transform_2(%arg0: i32) -> (i32, i32) {
    %c0_i32 = arith.constant 0 : i32
    %c0_i32_0 = arith.constant 0 : i32
    %c0_i32_1 = arith.constant 0 : i32
    return %c0_i32, %c0_i32_0 : i32, i32
  }
  func.func @transform_3(%arg0: i32) -> (i32, i32) {
    %c0_i32 = arith.constant 0 : i32
    %c0_i32_0 = arith.constant 0 : i32
    %c0_i32_1 = arith.constant 0 : i32
    return %c0_i32, %c0_i32_0 : i32, i32
  }
  func.func @transform_4(%arg0: i32) -> (i32, i32) {
    %c0_i32 = arith.constant 0 : i32
    %c0_i32_0 = arith.constant 0 : i32
    %c0_i32_1 = arith.constant 0 : i32
    return %c0_i32, %c0_i32_0 : i32, i32
  }
  func.func @transform_5(%arg0: i32) -> (i32, i32) {
    %c0_i32 = arith.constant 0 : i32
    %c0_i32_0 = arith.constant 0 : i32
    %c0_i32_1 = arith.constant 0 : i32
    return %c0_i32, %c0_i32_0 : i32, i32
  }
  func.func @transform_6(%arg0: i32) -> (i32, i32) {
    %c0_i32 = arith.constant 0 : i32
    %c0_i32_0 = arith.constant 0 : i32
    %c0_i32_1 = arith.constant 0 : i32
    return %c0_i32, %c0_i32_0 : i32, i32
  }
  func.func @transform_7(%arg0: i32) -> (i32, i32) {
    %c0_i32 = arith.constant 0 : i32
    %c0_i32_0 = arith.constant 0 : i32
    %c0_i32_1 = arith.constant 0 : i32
    return %c0_i32, %c0_i32_0 : i32, i32
  }
  func.func @transform_8(%arg0: i32) -> (i32, i32) {
    %c0_i32 = arith.constant 0 : i32
    %c0_i32_0 = arith.constant 0 : i32
    %c0_i32_1 = arith.constant 0 : i32
    return %c0_i32, %c0_i32_0 : i32, i32
  }
  func.func @transform_9(%arg0: i32) -> (i32, i32) {
    %c0_i32 = arith.constant 0 : i32
    %c0_i32_0 = arith.constant 0 : i32
    return %arg0, %c0_i32 : i32, i32
  }
}

</mosaic_0001>

<llo_original>
// kernel: tpu_custom_call.1
$region0: #{tpu_custom_call.1}
  #allocation0 [shape = 'u32[]', space=smem, size = 0x4, offset = 0x4, fixed_abs, tag = 'smem constant byte address 0x4 - core index']
  #allocation1 [shape = 'u32[144,128]{1,0:T(1,128)}', space=vmem, size = 0x12000, scoped, tag = 'internal scratch']
  %s0 = inlined_call_operand.hbm [shape: bf16[8,32], index: 0, kind: input, shape index: {}]
  %s1 = inlined_call_operand.hbm [shape: bf16[32,128], index: 1, kind: input, shape index: {}]
  %s2 = inlined_call_operand.vmem [shape: bf16[1,128], index: 2, kind: input, shape index: {}]
  %s3 = inlined_call_operand.hbm [shape: bf16[128,128], index: 3, kind: input, shape index: {}]
  %s4 = inlined_call_operand.vmem [shape: bf16[1,128], index: 4, kind: input, shape index: {}]
  %s5 = inlined_call_operand.hbm [shape: bf16[128,256], index: 5, kind: input, shape index: {}]
  %s6 = inlined_call_operand.vmem [shape: bf16[1,256], index: 6, kind: input, shape index: {}]
  %s7 = inlined_call_operand.hbm [shape: bf16[256,128], index: 7, kind: input, shape index: {}]
  %s8 = inlined_call_operand.vmem [shape: bf16[1,128], index: 8, kind: input, shape index: {}]
  %s9 = inlined_call_operand.hbm [shape: bf16[8,128], index: 9, kind: output, shape index: {}]
  %s10 = sld [smem:[#allocation0]]
  $region66: #{tpu_custom_call.1} parent=0
    _
  %s12 = ssub.s32 1, %s10
  %s13 = scalar_select 0, %s12, %s10
  $region1: #{tpu_custom_call.1} parent=0
    #allocation2 [shape = 'u8[2048]{0}', space=vmem, size = 0x800, scoped, tag = 'input window, operand 0, single buffered']
    #allocation3 [shape = 's32[1]{0}', space=sflag, size = 0x4, scoped, tag = 'scoped memory for tpu_custom_call.1']
    #allocation4 [shape = 's32[1]{0}', space=sflag, size = 0x4, scoped, tag = 'scoped memory for tpu_custom_call.1']
    #allocation5 [shape = 'u8[8192]{0}', space=vmem, size = 0x2000, scoped, tag = 'input window, operand 1, single buffered']
    #allocation6 [shape = 's32[1]{0}', space=sflag, size = 0x4, scoped, tag = 'scoped memory for tpu_custom_call.1']
    #allocation7 [shape = 'u8[32768]{0}', space=vmem, size = 0x8000, scoped, tag = 'input window, operand 3, single buffered']
    #allocation8 [shape = 'u8[65536]{0}', space=vmem, size = 0x10000, scoped, tag = 'input window, operand 5, single buffered']
    #allocation9 [shape = 's32[1]{0}', space=sflag, size = 0x4, scoped, tag = 'scoped memory for tpu_custom_call.1']
    #allocation10 [shape = 'u8[65536]{0}', space=vmem, size = 0x10000, scoped, tag = 'input window, operand 7, single buffered']
    #allocation11 [shape = 'u8[2048]{0}', space=vmem, size = 0x800, scoped, tag = 'output window, operand 0, single buffered']
    %14 = vsyncpa [#allocation3], 0
    %15 = vsyncpa [#allocation6], 0
    %16 = vsyncpa [#allocation9], 0
    %17 = vsyncpa [#allocation4], 0
    // Predicated region
    $region2: #{tpu_custom_call.1} parent=1 // pred_check
      _
    $region3: #{tpu_custom_call.1} parent=1 // pred_check_branch
      %19 = sbr.rel (0) target = $region5
    $region4: #{tpu_custom_call.1} parent=1 // pred_region
      %s21 = ssub.s32 64, 64
      %22 = vsyncadd [#allocation3], %s21
      %s24 = sshll.u32 [#allocation2], 4
      %s25 = int_to_ptr.vmem [resolvable:$true] %s24
      %27 = dma.hbm_to_vmem [thread:$0]  %s0, 64, %s25, [#allocation3]
    $region5: #{tpu_custom_call.1} parent=1 // pred_fallthru
      _
    // Predicated region
    $region6: #{tpu_custom_call.1} parent=1 // pred_check
      _
    $region7: #{tpu_custom_call.1} parent=1 // pred_check_branch
      %29 = sbr.rel (0) target = $region9
    $region8: #{tpu_custom_call.1} parent=1 // pred_region
      %s31 = ssub.s32 256, 256
      %32 = vsyncadd [#allocation6], %s31
      %s33 = sshll.u32 [#allocation5], 4
      %s34 = int_to_ptr.vmem [resolvable:$true] %s33
      %39 = dma.hbm_to_vmem [thread:$0]  %s1, 256, %s34, [#allocation6], 64, 64, 4
    $region9: #{tpu_custom_call.1} parent=1 // pred_fallthru
      _
    // Predicated region
    $region10: #{tpu_custom_call.1} parent=1 // pred_check
      _
    $region11: #{tpu_custom_call.1} parent=1 // pred_check_branch
      %41 = sbr.rel (0) target = $region13
    $region12: #{tpu_custom_call.1} parent=1 // pred_region
      _
    $region13: #{tpu_custom_call.1} parent=1 // pred_fallthru
      _
    // Predicated region
    $region14: #{tpu_custom_call.1} parent=1 // pred_check
      _
    $region15: #{tpu_custom_call.1} parent=1 // pred_check_branch
      %43 = sbr.rel (0) target = $region17
    $region16: #{tpu_custom_call.1} parent=1 // pred_region
      %s45 = ssub.s32 1024, 1024
      %46 = vsyncadd [#allocation6], %s45
      %s47 = sshll.u32 [#allocation7], 4
      %s48 = int_to_ptr.vmem [resolvable:$true] %s47
      %53 = dma.hbm_to_vmem [thread:$0]  %s3, 1024, %s48, [#allocation6], 64, 64, 4
    $region17: #{tpu_custom_call.1} parent=1 // pred_fallthru
      _
    // Predicated region
    $region18: #{tpu_custom_call.1} parent=1 // pred_check
      _
    $region19: #{tpu_custom_call.1} parent=1 // pred_check_branch
      %55 = sbr.rel (0) target = $region21
    $region20: #{tpu_custom_call.1} parent=1 // pred_region
      _
    $region21: #{tpu_custom_call.1} parent=1 // pred_fallthru
      _
    // Predicated region
    $region22: #{tpu_custom_call.1} parent=1 // pred_check
      _
    $region23: #{tpu_custom_call.1} parent=1 // pred_check_branch
      %57 = sbr.rel (0) target = $region25
    $region24: #{tpu_custom_call.1} parent=1 // pred_region
      %s59 = ssub.s32 2048, 2048
      %60 = vsyncadd [#allocation9], %s59
      %s61 = sshll.u32 [#allocation8], 4
      %s62 = int_to_ptr.vmem [resolvable:$true] %s61
      %67 = dma.hbm_to_vmem [thread:$0]  %s5, 2048, %s62, [#allocation9], 128, 128, 8
    $region25: #{tpu_custom_call.1} parent=1 // pred_fallthru
      _
    // Predicated region
    $region26: #{tpu_custom_call.1} parent=1 // pred_check
      _
    $region27: #{tpu_custom_call.1} parent=1 // pred_check_branch
      %69 = sbr.rel (0) target = $region29
    $region28: #{tpu_custom_call.1} parent=1 // pred_region
      _
    $region29: #{tpu_custom_call.1} parent=1 // pred_fallthru
      _
    // Predicated region
    $region30: #{tpu_custom_call.1} parent=1 // pred_check
      _
    $region31: #{tpu_custom_call.1} parent=1 // pred_check_branch
      %71 = sbr.rel (0) target = $region33
    $region32: #{tpu_custom_call.1} parent=1 // pred_region
      %s73 = ssub.s32 2048, 2048
      %74 = vsyncadd [#allocation9], %s73
      %s75 = sshll.u32 [#allocation10], 4
      %s76 = int_to_ptr.vmem [resolvable:$true] %s75
      %81 = dma.hbm_to_vmem [thread:$0]  %s7, 2048, %s76, [#allocation9], 64, 64, 4
    $region33: #{tpu_custom_call.1} parent=1 // pred_fallthru
      _
    // Predicated region
    $region34: #{tpu_custom_call.1} parent=1 // pred_check
      _
    $region35: #{tpu_custom_call.1} parent=1 // pred_check_branch
      %83 = sbr.rel (0) target = $region37
    $region36: #{tpu_custom_call.1} parent=1 // pred_region
      _
    $region37: #{tpu_custom_call.1} parent=1 // pred_fallthru
      _
    // Predicated region
    $region38: #{tpu_custom_call.1} parent=1 // pred_check
      _
    $region39: #{tpu_custom_call.1} parent=1 // pred_check_branch
      %85 = sbr.rel (0) target = $region41
    $region40: #{tpu_custom_call.1} parent=1 // pred_region
      %86 = dma.done [#allocation3], 64
    $region41: #{tpu_custom_call.1} parent=1 // pred_fallthru
      _
    // Predicated region
    $region42: #{tpu_custom_call.1} parent=1 // pred_check
      _
    $region43: #{tpu_custom_call.1} parent=1 // pred_check_branch
      %88 = sbr.rel (0) target = $region45
    $region44: #{tpu_custom_call.1} parent=1 // pred_region
      %89 = dma.done [#allocation6], 256
    $region45: #{tpu_custom_call.1} parent=1 // pred_fallthru
      _
    // Predicated region
    $region46: #{tpu_custom_call.1} parent=1 // pred_check
      _
    $region47: #{tpu_custom_call.1} parent=1 // pred_check_branch
      %91 = sbr.rel (0) target = $region49
    $region48: #{tpu_custom_call.1} parent=1 // pred_region
      %92 = dma.done [#allocation6], 1024
    $region49: #{tpu_custom_call.1} parent=1 // pred_fallthru
      _
    // Predicated region
    $region50: #{tpu_custom_call.1} parent=1 // pred_check
      _
    $region51: #{tpu_custom_call.1} parent=1 // pred_check_branch
      %94 = sbr.rel (0) target = $region53
    $region52: #{tpu_custom_call.1} parent=1 // pred_region
      %95 = dma.done [#allocation9], 2048
    $region53: #{tpu_custom_call.1} parent=1 // pred_fallthru
      _
    // Predicated region
    $region54: #{tpu_custom_call.1} parent=1 // pred_check
      _
    $region55: #{tpu_custom_call.1} parent=1 // pred_check_branch
      %97 = sbr.rel (0) target = $region57
    $region56: #{tpu_custom_call.1} parent=1 // pred_region
      %98 = dma.done [#allocation9], 2048
    $region57: #{tpu_custom_call.1} parent=1 // pred_fallthru
      _
    %v100 = vld [vmem:[#allocation2] sm:$0xf]
    %v101 = vld [vmem:[#allocation5] sm:$0xf]
    %v102 = vld [vmem:[#allocation5 + $0x4] sm:$0xf]
    %v103 = vld [vmem:[#allocation5 + $0x8] sm:$0xf]
    %v104 = vld [vmem:[#allocation5 + $0xc] sm:$0xf]
    %v105 = vld [vmem:[%s2] sm:$0x1]
    %v106 = vunpack.c.l.bf16 %v105
    %v107 = vlaneseq
    %v108 = vshrl.u32 %v107, 7
    %v109 = vsub.s32 0, %v108
    %v110 = vrot.slane %v106, %v109
    %v115 = vunpack.c.l.b16 %v101
    %v116 = vunpack.c.l.b16 %v102
    %v117 = vunpack.c.l.b16 %v103
    %v118 = vunpack.c.l.b16 %v104
    %v119 = vpack.c.b16 %v116, %v115
    %v120 = vpack.c.b16 %v118, %v117
    %vm123 = vcmask 261120
    %v125 = vsel %vm123, %v100, 0
    %127 = vmatprep.subr.bf16.mxu0 0
    %128 = vmatpush1.bf16.msra.mxu0 0
    %129 = vmatprep.subr.bf16.mxu0 0
    %130 = vmatpush1.bf16.msra.mxu0 0
    %131 = vmatprep.subr.bf16.mxu0 0
    %132 = vmatpush1.bf16.msra.mxu0 0
    %133 = vmatprep.subr.bf16.mxu0 0
    %134 = vmatpush1.bf16.msra.mxu0 0
    %135 = vmatprep.subr.bf16.mxu0 0
    %136 = vmatpush1.bf16.msra.mxu0 0
    %137 = vmatprep.subr.bf16.mxu0 0
    %138 = vmatpush1.bf16.msra.mxu0 0
    %139 = vmatprep.subr.bf16.mxu0 0
    %140 = vmatpush1.bf16.msra.mxu0 %v120
    %141 = vmatprep.subr.bf16.mxu0 0
    %142 = vmatpush1.bf16.msra.mxu0 %v119
    %143 = vmatprep.subr.bf16.mxu0 0
    %144 = vmatpush2.bf16.msra.mxu0 0
    %145 = vmatprep.subr.bf16.mxu0 0
    %146 = vmatpush2.bf16.msra.mxu0 0
    %147 = vmatprep.subr.bf16.mxu0 0
    %148 = vmatpush2.bf16.msra.mxu0 0
    %149 = vmatprep.subr.bf16.mxu0 0
    %150 = vmatpush2.bf16.msra.mxu0 0
    %151 = vmatprep.subr.bf16.mxu0 0
    %152 = vmatpush2.bf16.msra.mxu0 0
    %153 = vmatprep.subr.bf16.mxu0 0
    %154 = vmatpush2.bf16.msra.mxu0 0
    %155 = vmatprep.subr.bf16.mxu0 0
    %156 = vmatpush2.bf16.msra.mxu0 0
    %157 = vmatprep.subr.bf16.mxu0 0
    %158 = vmatpush2.bf16.msra.mxu0 0
    %159 = vmatprep.mubr.bf16.mxu0 0
    %160 = vmatmul.mubr.bf16.gmra.mxu0 %v125
    %v161 = vpop.f32.mrf.mxu0
    %v162 = vadd.f32 %v110, %v161
    %v163 = vpop.f32.mrf.mxu0
    %v164 = vpop.f32.mrf.mxu0
    %v165 = vpop.f32.mrf.mxu0
    %166 = vdwg.mxu0
    %v167 = vmax.f32 %v162, 0.0
    %v168 = vpack.c.bf16 %v167, %v167
    %v169 = vld [vmem:[#allocation7] sm:$0xf]
    %v170 = vld [vmem:[#allocation7 + $0x4] sm:$0xf]
    %v171 = vld [vmem:[#allocation7 + $0x8] sm:$0xf]
    %v172 = vld [vmem:[#allocation7 + $0xc] sm:$0xf]
    %v173 = vld [vmem:[#allocation7 + $0x10] sm:$0xf]
    %v174 = vld [vmem:[#allocation7 + $0x14] sm:$0xf]
    %v175 = vld [vmem:[#allocation7 + $0x18] sm:$0xf]
    %v176 = vld [vmem:[#allocation7 + $0x1c] sm:$0xf]
    %v177 = vld [vmem:[#allocation7 + $0x20] sm:$0xf]
    %v178 = vld [vmem:[#allocation7 + $0x24] sm:$0xf]
    %v179 = vld [vmem:[#allocation7 + $0x28] sm:$0xf]
    %v180 = vld [vmem:[#allocation7 + $0x2c] sm:$0xf]
    %v181 = vld [vmem:[#allocation7 + $0x30] sm:$0xf]
    %v182 = vld [vmem:[#allocation7 + $0x34] sm:$0xf]
    %v183 = vld [vmem:[#allocation7 + $0x38] sm:$0xf]
    %v184 = vld [vmem:[#allocation7 + $0x3c] sm:$0xf]
    %v185 = vld [vmem:[%s4] sm:$0x1]
    %v186 = vunpack.c.l.bf16 %v185
    %v187 = vlaneseq
    %v188 = vshrl.u32 %v187, 7
    %v189 = vsub.s32 0, %v188
    %v190 = vrot.slane %v186, %v189
    %v207 = vunpack.c.l.b16 %v169
    %v208 = vunpack.c.l.b16 %v170
    %v209 = vunpack.c.l.b16 %v171
    %v210 = vunpack.c.l.b16 %v172
    %v211 = vunpack.c.l.b16 %v173
    %v212 = vunpack.c.l.b16 %v174
    %v213 = vunpack.c.l.b16 %v175
    %v214 = vunpack.c.l.b16 %v176
    %v215 = vunpack.c.l.b16 %v177
    %v216 = vunpack.c.l.b16 %v178
    %v217 = vunpack.c.l.b16 %v179
    %v218 = vunpack.c.l.b16 %v180
    %v219 = vunpack.c.l.b16 %v181
    %v220 = vunpack.c.l.b16 %v182
    %v221 = vunpack.c.l.b16 %v183
    %v222 = vunpack.c.l.b16 %v184
    %v223 = vpack.c.b16 %v208, %v207
    %v224 = vpack.c.b16 %v210, %v209
    %v225 = vpack.c.b16 %v212, %v211
    %v226 = vpack.c.b16 %v214, %v213
    %v227 = vpack.c.b16 %v216, %v215
    %v228 = vpack.c.b16 %v218, %v217
    %v229 = vpack.c.b16 %v220, %v219
    %v230 = vpack.c.b16 %v222, %v221
    %239 = vmatprep.subr.bf16.mxu0 0
    %240 = vmatpush1.bf16.msra.mxu0 %v230
    %241 = vmatprep.subr.bf16.mxu0 0
    %242 = vmatpush1.bf16.msra.mxu0 %v229
    %243 = vmatprep.subr.bf16.mxu0 0
    %244 = vmatpush1.bf16.msra.mxu0 %v228
    %245 = vmatprep.subr.bf16.mxu0 0
    %246 = vmatpush1.bf16.msra.mxu0 %v227
    %247 = vmatprep.subr.bf16.mxu0 0
    %248 = vmatpush1.bf16.msra.mxu0 %v226
    %249 = vmatprep.subr.bf16.mxu0 0
    %250 = vmatpush1.bf16.msra.mxu0 %v225
    %251 = vmatprep.subr.bf16.mxu0 0
    %252 = vmatpush1.bf16.msra.mxu0 %v224
    %253 = vmatprep.subr.bf16.mxu0 0
    %254 = vmatpush1.bf16.msra.mxu0 %v223
    %255 = vmatprep.subr.bf16.mxu0 0
    %256 = vmatpush2.bf16.msra.mxu0 0
    %257 = vmatprep.subr.bf16.mxu0 0
    %258 = vmatpush2.bf16.msra.mxu0 0
    %259 = vmatprep.subr.bf16.mxu0 0
    %260 = vmatpush2.bf16.msra.mxu0 0
    %261 = vmatprep.subr.bf16.mxu0 0
    %262 = vmatpush2.bf16.msra.mxu0 0
    %263 = vmatprep.subr.bf16.mxu0 0
    %264 = vmatpush2.bf16.msra.mxu0 0
    %265 = vmatprep.subr.bf16.mxu0 0
    %266 = vmatpush2.bf16.msra.mxu0 0
    %267 = vmatprep.subr.bf16.mxu0 0
    %268 = vmatpush2.bf16.msra.mxu0 0
    %269 = vmatprep.subr.bf16.mxu0 0
    %270 = vmatpush2.bf16.msra.mxu0 0
    %271 = vmatprep.mubr.bf16.mxu0 0
    %272 = vmatmul.mubr.bf16.gmra.mxu0 %v168
    %v273 = vpop.f32.mrf.mxu0
    %v274 = vadd.f32 %v190, %v273
    %v275 = vpop.f32.mrf.mxu0
    %v276 = vpop.f32.mrf.mxu0
    %v277 = vpop.f32.mrf.mxu0
    %278 = vdwg.mxu0
    %v279 = vmax.f32 %v274, 0.0
    %v280 = vpack.c.bf16 %v279, %v279
    %v281 = vld [vmem:[#allocation8] sm:$0xff]
    %v282 = vld [vmem:[#allocation8 + $0x8] sm:$0xff]
    %v283 = vld [vmem:[#allocation8 + $0x10] sm:$0xff]
    %v284 = vld [vmem:[#allocation8 + $0x18] sm:$0xff]
    %v285 = vld [vmem:[#allocation8 + $0x20] sm:$0xff]
    %v286 = vld [vmem:[#allocation8 + $0x28] sm:$0xff]
    %v287 = vld [vmem:[#allocation8 + $0x30] sm:$0xff]
    %v288 = vld [vmem:[#allocation8 + $0x38] sm:$0xff]
    %v289 = vld [vmem:[#allocation8 + $0x40] sm:$0xff]
    %v290 = vld [vmem:[#allocation8 + $0x48] sm:$0xff]
    %v291 = vld [vmem:[#allocation8 + $0x50] sm:$0xff]
    %v292 = vld [vmem:[#allocation8 + $0x58] sm:$0xff]
    %v293 = vld [vmem:[#allocation8 + $0x60] sm:$0xff]
    %v294 = vld [vmem:[#allocation8 + $0x68] sm:$0xff]
    %v295 = vld [vmem:[#allocation8 + $0x70] sm:$0xff]
    %v296 = vld [vmem:[#allocation8 + $0x78] sm:$0xff]
    %v297 = vld [vmem:[%s6] sm:$0x3]
    %v298 = vunpack.c.l.bf16 %v297
    %v300 = vlaneseq
    %v301 = vshrl.u32 %v300, 7
    %v302 = vsub.s32 0, %v301
    %v303 = vrot.slane %v298, %v302
    %v304 = vlaneseq
    %v305 = vshrl.u32 %v304, 7
    %v306 = vsub.s32 2, %v305
    %v307 = vrot.slane %v298, %v306
    %v310 = vlaneseq
    %v311 = vshrl.u32 %v310, 7
    %v312 = vsub.s32 0, %v311
    %v313 = vrot.slane %v303, %v312
    %v314 = vlaneseq
    %v315 = vshrl.u32 %v314, 7
    %v316 = vsub.s32 0, %v315
    %v317 = vrot.slane %v307, %v316
    %v334 = vunpack.c.l.b16 %v281
    %v335 = vunpack.c.h.b16 %v281
    %v336 = vunpack.c.l.b16 %v282
    %v337 = vunpack.c.h.b16 %v282
    %v338 = vunpack.c.l.b16 %v283
    %v339 = vunpack.c.h.b16 %v283
    %v340 = vunpack.c.l.b16 %v284
    %v341 = vunpack.c.h.b16 %v284
    %v342 = vunpack.c.l.b16 %v285
    %v343 = vunpack.c.h.b16 %v285
    %v344 = vunpack.c.l.b16 %v286
    %v345 = vunpack.c.h.b16 %v286
    %v346 = vunpack.c.l.b16 %v287
    %v347 = vunpack.c.h.b16 %v287
    %v348 = vunpack.c.l.b16 %v288
    %v349 = vunpack.c.h.b16 %v288
    %v350 = vunpack.c.l.b16 %v289
    %v351 = vunpack.c.h.b16 %v289
    %v352 = vunpack.c.l.b16 %v290
    %v353 = vunpack.c.h.b16 %v290
    %v354 = vunpack.c.l.b16 %v291
    %v355 = vunpack.c.h.b16 %v291
    %v356 = vunpack.c.l.b16 %v292
    %v357 = vunpack.c.h.b16 %v292
    %v358 = vunpack.c.l.b16 %v293
    %v359 = vunpack.c.h.b16 %v293
    %v360 = vunpack.c.l.b16 %v294
    %v361 = vunpack.c.h.b16 %v294
    %v362 = vunpack.c.l.b16 %v295
    %v363 = vunpack.c.h.b16 %v295
    %v364 = vunpack.c.l.b16 %v296
    %v365 = vunpack.c.h.b16 %v296
    %v366 = vpack.c.b16 %v336, %v334
    %v367 = vpack.c.b16 %v337, %v335
    %v368 = vpack.c.b16 %v340, %v338
    %v369 = vpack.c.b16 %v341, %v339
    %v370 = vpack.c.b16 %v344, %v342
    %v371 = vpack.c.b16 %v345, %v343
    %v372 = vpack.c.b16 %v348, %v346
    %v373 = vpack.c.b16 %v349, %v347
    %v374 = vpack.c.b16 %v352, %v350
    %v375 = vpack.c.b16 %v353, %v351
    %v376 = vpack.c.b16 %v356, %v354
    %v377 = vpack.c.b16 %v357, %v355
    %v378 = vpack.c.b16 %v360, %v358
    %v379 = vpack.c.b16 %v361, %v359
    %v380 = vpack.c.b16 %v364, %v362
    %v381 = vpack.c.b16 %v365, %v363
    %398 = vmatprep.subr.bf16.mxu0 %v381
    %399 = vmatpush1.bf16.msra.mxu0 %v380
    %400 = vmatprep.subr.bf16.mxu0 %v379
    %401 = vmatpush1.bf16.msra.mxu0 %v378
    %402 = vmatprep.subr.bf16.mxu0 %v377
    %403 = vmatpush1.bf16.msra.mxu0 %v376
    %404 = vmatprep.subr.bf16.mxu0 %v375
    %405 = vmatpush1.bf16.msra.mxu0 %v374
    %406 = vmatprep.subr.bf16.mxu0 %v373
    %407 = vmatpush1.bf16.msra.mxu0 %v372
    %408 = vmatprep.subr.bf16.mxu0 %v371
    %409 = vmatpush1.bf16.msra.mxu0 %v370
    %410 = vmatprep.subr.bf16.mxu0 %v369
    %411 = vmatpush1.bf16.msra.mxu0 %v368
    %412 = vmatprep.subr.bf16.mxu0 %v367
    %413 = vmatpush1.bf16.msra.mxu0 %v366
    %414 = vmatprep.subr.bf16.mxu0 0
    %415 = vmatpush2.bf16.msra.mxu0 0
    %416 = vmatprep.subr.bf16.mxu0 0
    %417 = vmatpush2.bf16.msra.mxu0 0
    %418 = vmatprep.subr.bf16.mxu0 0
    %419 = vmatpush2.bf16.msra.mxu0 0
    %420 = vmatprep.subr.bf16.mxu0 0
    %421 = vmatpush2.bf16.msra.mxu0 0
    %422 = vmatprep.subr.bf16.mxu0 0
    %423 = vmatpush2.bf16.msra.mxu0 0
    %424 = vmatprep.subr.bf16.mxu0 0
    %425 = vmatpush2.bf16.msra.mxu0 0
    %426 = vmatprep.subr.bf16.mxu0 0
    %427 = vmatpush2.bf16.msra.mxu0 0
    %428 = vmatprep.subr.bf16.mxu0 0
    %429 = vmatpush2.bf16.msra.mxu0 0
    %430 = vmatprep.mubr.bf16.mxu0 0
    %431 = vmatmul.mubr.bf16.gmra.mxu0 %v280
    %v432 = vpop.f32.mrf.mxu0
    %v433 = vadd.f32 %v313, %v432
    %v434 = vpop.f32.mrf.mxu0
    %v435 = vadd.f32 %v317, %v434
    %v436 = vpop.f32.mrf.mxu0
    %v437 = vpop.f32.mrf.mxu0
    %438 = vdwg.mxu0
    %v439 = vmax.f32 %v433, 0.0
    %v440 = vmax.f32 %v435, 0.0
    %v441 = vpack.c.bf16 %v439, %v439
    %v442 = vpack.c.bf16 %v440, %v440
    %v443 = vld [vmem:[#allocation10] sm:$0xf]
    %v444 = vld [vmem:[#allocation10 + $0x4] sm:$0xf]
    %v445 = vld [vmem:[#allocation10 + $0x8] sm:$0xf]
    %v446 = vld [vmem:[#allocation10 + $0xc] sm:$0xf]
    %v447 = vld [vmem:[#allocation10 + $0x10] sm:$0xf]
    %v448 = vld [vmem:[#allocation10 + $0x14] sm:$0xf]
    %v449 = vld [vmem:[#allocation10 + $0x18] sm:$0xf]
    %v450 = vld [vmem:[#allocation10 + $0x1c] sm:$0xf]
    %v451 = vld [vmem:[#allocation10 + $0x20] sm:$0xf]
    %v452 = vld [vmem:[#allocation10 + $0x24] sm:$0xf]
    %v453 = vld [vmem:[#allocation10 + $0x28] sm:$0xf]
    %v454 = vld [vmem:[#allocation10 + $0x2c] sm:$0xf]
    %v455 = vld [vmem:[#allocation10 + $0x30] sm:$0xf]
    %v456 = vld [vmem:[#allocation10 + $0x34] sm:$0xf]
    %v457 = vld [vmem:[#allocation10 + $0x38] sm:$0xf]
    %v458 = vld [vmem:[#allocation10 + $0x3c] sm:$0xf]
    %v459 = vld [vmem:[#allocation10 + $0x40] sm:$0xf]
    %v460 = vld [vmem:[#allocation10 + $0x44] sm:$0xf]
    %v461 = vld [vmem:[#allocation10 + $0x48] sm:$0xf]
    %v462 = vld [vmem:[#allocation10 + $0x4c] sm:$0xf]
    %v463 = vld [vmem:[#allocation10 + $0x50] sm:$0xf]
    %v464 = vld [vmem:[#allocation10 + $0x54] sm:$0xf]
    %v465 = vld [vmem:[#allocation10 + $0x58] sm:$0xf]
    %v466 = vld [vmem:[#allocation10 + $0x5c] sm:$0xf]
    %v467 = vld [vmem:[#allocation10 + $0x60] sm:$0xf]
    %v468 = vld [vmem:[#allocation10 + $0x64] sm:$0xf]
    %v469 = vld [vmem:[#allocation10 + $0x68] sm:$0xf]
    %v470 = vld [vmem:[#allocation10 + $0x6c] sm:$0xf]
    %v471 = vld [vmem:[#allocation10 + $0x70] sm:$0xf]
    %v472 = vld [vmem:[#allocation10 + $0x74] sm:$0xf]
    %v473 = vld [vmem:[#allocation10 + $0x78] sm:$0xf]
    %v474 = vld [vmem:[#allocation10 + $0x7c] sm:$0xf]
    %v475 = vld [vmem:[%s8] sm:$0x1]
    %v476 = vunpack.c.l.bf16 %v475
    %v477 = vlaneseq
    %v478 = vshrl.u32 %v477, 7
    %v479 = vsub.s32 0, %v478
    %v480 = vrot.slane %v476, %v479
    %v513 = vunpack.c.l.b16 %v443
    %v514 = vunpack.c.l.b16 %v444
    %v515 = vunpack.c.l.b16 %v445
    %v516 = vunpack.c.l.b16 %v446
    %v517 = vunpack.c.l.b16 %v447
    %v518 = vunpack.c.l.b16 %v448
    %v519 = vunpack.c.l.b16 %v449
    %v520 = vunpack.c.l.b16 %v450
    %v521 = vunpack.c.l.b16 %v451
    %v522 = vunpack.c.l.b16 %v452
    %v523 = vunpack.c.l.b16 %v453
    %v524 = vunpack.c.l.b16 %v454
    %v525 = vunpack.c.l.b16 %v455
    %v526 = vunpack.c.l.b16 %v456
    %v527 = vunpack.c.l.b16 %v457
    %v528 = vunpack.c.l.b16 %v458
    %v529 = vunpack.c.l.b16 %v459
    %v530 = vunpack.c.l.b16 %v460
    %v531 = vunpack.c.l.b16 %v461
    %v532 = vunpack.c.l.b16 %v462
    %v533 = vunpack.c.l.b16 %v463
    %v534 = vunpack.c.l.b16 %v464
    %v535 = vunpack.c.l.b16 %v465
    %v536 = vunpack.c.l.b16 %v466
    %v537 = vunpack.c.l.b16 %v467
    %v538 = vunpack.c.l.b16 %v468
    %v539 = vunpack.c.l.b16 %v469
    %v540 = vunpack.c.l.b16 %v470
    %v541 = vunpack.c.l.b16 %v471
    %v542 = vunpack.c.l.b16 %v472
    %v543 = vunpack.c.l.b16 %v473
    %v544 = vunpack.c.l.b16 %v474
    %v545 = vpack.c.b16 %v514, %v513
    %v546 = vpack.c.b16 %v516, %v515
    %v547 = vpack.c.b16 %v518, %v517
    %v548 = vpack.c.b16 %v520, %v519
    %v549 = vpack.c.b16 %v522, %v521
    %v550 = vpack.c.b16 %v524, %v523
    %v551 = vpack.c.b16 %v526, %v525
    %v552 = vpack.c.b16 %v528, %v527
    %v553 = vpack.c.b16 %v530, %v529
    %v554 = vpack.c.b16 %v532, %v531
    %v555 = vpack.c.b16 %v534, %v533
    %v556 = vpack.c.b16 %v536, %v535
    %v557 = vpack.c.b16 %v538, %v537
    %v558 = vpack.c.b16 %v540, %v539
    %v559 = vpack.c.b16 %v542, %v541
    %v560 = vpack.c.b16 %v544, %v543
    %577 = vmatprep.subr.bf16.mxu0 0
    %578 = vmatpush1.bf16.msra.mxu0 %v552
    %579 = vmatprep.subr.bf16.mxu0 0
    %580 = vmatpush1.bf16.msra.mxu0 %v551
    %581 = vmatprep.subr.bf16.mxu0 0
    %582 = vmatpush1.bf16.msra.mxu0 %v550
    %583 = vmatprep.subr.bf16.mxu0 0
    %584 = vmatpush1.bf16.msra.mxu0 %v549
    %585 = vmatprep.subr.bf16.mxu0 0
    %586 = vmatpush1.bf16.msra.mxu0 %v548
    %587 = vmatprep.subr.bf16.mxu0 0
    %588 = vmatpush1.bf16.msra.mxu0 %v547
    %589 = vmatprep.subr.bf16.mxu0 0
    %590 = vmatpush1.bf16.msra.mxu0 %v546
    %591 = vmatprep.subr.bf16.mxu0 0
    %592 = vmatpush1.bf16.msra.mxu0 %v545
    %593 = vmatprep.subr.bf16.mxu0 0
    %594 = vmatpush2.bf16.msra.mxu0 %v560
    %595 = vmatprep.subr.bf16.mxu0 0
    %596 = vmatpush2.bf16.msra.mxu0 %v559
    %597 = vmatprep.subr.bf16.mxu0 0
    %598 = vmatpush2.bf16.msra.mxu0 %v558
    %599 = vmatprep.subr.bf16.mxu0 0
    %600 = vmatpush2.bf16.msra.mxu0 %v557
    %601 = vmatprep.subr.bf16.mxu0 0
    %602 = vmatpush2.bf16.msra.mxu0 %v556
    %603 = vmatprep.subr.bf16.mxu0 0
    %604 = vmatpush2.bf16.msra.mxu0 %v555
    %605 = vmatprep.subr.bf16.mxu0 0
    %606 = vmatpush2.bf16.msra.mxu0 %v554
    %607 = vmatprep.subr.bf16.mxu0 0
    %608 = vmatpush2.bf16.msra.mxu0 %v553
    %609 = vmatprep.mubr.bf16.mxu0 %v442
    %610 = vmatmul.mubr.bf16.gmra.mxu0 %v441
    %v611 = vpop.f32.mrf.mxu0
    %v612 = vadd.f32 %v480, %v611
    %v613 = vpop.f32.mrf.mxu0
    %v614 = vpop.f32.mrf.mxu0
    %v615 = vpop.f32.mrf.mxu0
    %616 = vdwg.mxu0
    %v617 = vpack.c.bf16 %v612, %v612
    %618 = vst [vmem:[#allocation11] sm:$0xf] %v617
    // Predicated region
    $region58: #{tpu_custom_call.1} parent=1 // pred_check
      _
    $region59: #{tpu_custom_call.1} parent=1 // pred_check_branch
      %620 = sbr.rel (0) target = $region61
    $region60: #{tpu_custom_call.1} parent=1 // pred_region
      %s622 = ssub.s32 64, 64
      %623 = vsyncadd [#allocation4], %s622
      %s625 = sshll.u32 [#allocation11], 4
      %s626 = int_to_ptr.vmem [resolvable:$true] %s625
      %628 = dma.vmem_to_hbm [thread:$0]  %s626, 64, %s9, [#allocation4]
    $region61: #{tpu_custom_call.1} parent=1 // pred_fallthru
      _
    // Predicated region
    $region62: #{tpu_custom_call.1} parent=1 // pred_check
      _
    $region63: #{tpu_custom_call.1} parent=1 // pred_check_branch
      %630 = sbr.rel (0) target = $region65
    $region64: #{tpu_custom_call.1} parent=1 // pred_region
      %631 = dma.done [#allocation4], 64
    $region65: #{tpu_custom_call.1} parent=1 // pred_fallthru
      _
    %632 = vsyncpa [#allocation3], 1
    %633 = vsyncpa [#allocation6], 1
    %634 = vsyncpa [#allocation9], 1
    %635 = vsyncpa [#allocation4], 1

</llo_original>
